<compile_context>
chip_gen: v7x
topology: tpu7x:2x2x1
jax: 0.10.0
libtpu: 0.0.40
codegen_flags: <defaults>
</compile_context>

<pallas_src>
from functools import partial

import jax
import jax.numpy as jnp
from jax.experimental import pallas as pl
from jax.experimental.pallas import tpu as pltpu


def emogru_kernel(ids_ref, proj_ref, whh_ref, ghb_ref, fcw_ref, fcb_ref,
                  out_ref, gi_ref):
    """GRU recurrence + final Linear, single invocation.

    ids_ref  : (S*B_pad, 1) int32   token ids, batch-padded, time-major
    proj_ref : (V_pad, 128) f32     pre-projected embedding table
                                    columns [r | z | n | 0pad], b_ih and the
                                    r/z part of b_hh already folded in
    whh_ref  : (H, 128)     bf16    W_hh^T, columns [r | z | n | 0pad]
    ghb_ref  : (1, 128)     f32     [0 | 0 | b_hh_n | 0]
    fcw_ref  : (H, 128)     bf16    fc weight^T, lane-padded
    fcb_ref  : (1, 128)     f32     fc bias, lane-padded
    out_ref  : (B_pad, 128) f32
    gi_ref   : (S*B_pad, 128) f32   VMEM scratch for the gathered input gates
    """
    SB = ids_ref.shape[0]
    B = out_ref.shape[0]
    H = whh_ref.shape[0]
    V = proj_ref.shape[0]
    G = whh_ref.shape[1]
    S = SB // B

    # ---- one-shot input-gate gather (off the recurrence critical path) -----
    # One-hot MXU gather: (SB, V_pad) @ (V_pad, 128).  V is tiny (~50 rows),
    # so this is far cheaper than a wrapper-side XLA gather + HBM round trip.
    ids = ids_ref[...]                                             # (SB, 1) i32
    vocab_iota = jax.lax.broadcasted_iota(jnp.int32, (SB, V), 1)
    onehot = (vocab_iota == ids).astype(jnp.float32)               # (SB, V)
    gi_ref[...] = jnp.dot(onehot, proj_ref[...],
                          preferred_element_type=jnp.float32)      # (SB, 128)

    # Hoisted loop-invariants (resident in vregs across the unrolled loop).
    whh = whh_ref[...]                                             # (H, 128) bf16
    ghb = jnp.broadcast_to(ghb_ref[...], (B, G))                   # (B, 128) f32

    def step(t, h):
        off = pl.multiple_of(t * B, B)                 # sublane-aligned offset
        gi = gi_ref[pl.ds(off, B), :]                  # (B, 128) f32
        # Recurrent matmul only: bf16 operands -> single MXU pass, f32 acc.
        gh = jnp.dot(h.astype(jnp.bfloat16), whh,
                     preferred_element_type=jnp.float32) + ghb     # (B, 128) f32
        # One merged sigmoid over the r|z lanes (single EUP push).
        rz = jax.nn.sigmoid(gi[:, :2 * H] + gh[:, :2 * H])
        r = rz[:, :H]
        z = rz[:, H:2 * H]
        n = jnp.tanh(gi[:, 2 * H:3 * H] + r * gh[:, 2 * H:3 * H])
        return (1.0 - z) * n + z * h

    h0 = jnp.zeros((B, H), jnp.float32)
    # S is small (8): full unroll keeps LLO scheduling visibility.
    # TODO(synk): for long sequences (S > ~64) switch to a partial unroll (4-8)
    # and/or chunk gi over S with a BlockSpec to stay inside v7x's 64 MiB VMEM.
    h_last = jax.lax.fori_loop(0, S, step, h0, unroll=True)

    # output[-1, :, :] -> dropout (identity in eval) -> fc
    # TODO(synk): training-mode dropout (p=0.5) not applied; eval semantics only.
    out_ref[...] = (jnp.dot(h_last.astype(jnp.bfloat16), fcw_ref[...],
                            preferred_element_type=jnp.float32)
                    + fcb_ref[...])


def prepare_params(params):
    """One-time parameter preprocessing (fusion / padding / casts).

    Keeps every per-call wrapper op out of the inference path.
    """
    emb = params["embedding"].astype(jnp.float32)      # (V, E)
    w_ih = params["w_ih"].astype(jnp.float32)          # (3H, E)  gates [r, z, n]
    w_hh = params["w_hh"].astype(jnp.float32)          # (3H, H)
    b_ih = params["b_ih"].astype(jnp.float32)          # (3H,)
    b_hh = params["b_hh"].astype(jnp.float32)          # (3H,)
    fc_w = params["fc_w"].astype(jnp.float32)          # (O, H)
    fc_b = params["fc_b"].astype(jnp.float32)          # (O,)

    V, _ = emb.shape
    H = w_hh.shape[1]
    O = fc_w.shape[0]
    G = 3 * H

    SUBLANE, LANE = 8, 128
    V_pad = max(SUBLANE, ((V + SUBLANE - 1) // SUBLANE) * SUBLANE)
    G_pad = max(LANE, ((G + LANE - 1) // LANE) * LANE)
    O_pad = max(LANE, ((O + LANE - 1) // LANE) * LANE)

    # Pre-projected embedding table: proj[v] = emb[v] @ W_ih^T + b_ih, with the
    # r/z part of b_hh folded in as well (the n-gate hidden bias must stay
    # inside the r*(...) term, so it lives in ghb below).
    proj = emb @ w_ih.T + b_ih                                   # (V, 3H)
    proj = proj + jnp.concatenate([b_hh[:2 * H], jnp.zeros((H,), jnp.float32)])
    proj_pad = jnp.zeros((V_pad, G_pad), jnp.float32).at[:V, :G].set(proj)

    # Recurrent weight W_hh^T, output columns padded to 128 lanes, bf16 for a
    # single-pass MXU matmul on the serial chain (accumulate stays f32).
    whh_pad = (jnp.zeros((H, G_pad), jnp.float32).at[:, :G].set(w_hh.T)
               .astype(jnp.bfloat16))

    # gh bias: only the n-gate hidden bias (must sit inside r * (.)).
    ghb = jnp.zeros((1, G_pad), jnp.float32).at[0, 2 * H:3 * H].set(b_hh[2 * H:])

    # fc weight/bias, transposed and lane-padded.
    fcw_pad = (jnp.zeros((H, O_pad), jnp.float32).at[:, :O].set(fc_w.T)
               .astype(jnp.bfloat16))
    fcb_pad = jnp.zeros((1, O_pad), jnp.float32).at[0, :O].set(fc_b)

    return {"proj": proj_pad, "whh": whh_pad, "ghb": ghb,
            "fcw": fcw_pad, "fcb": fcb_pad}


@partial(jax.jit, static_argnames=("output_size",))
def emogru_forward(token_ids, prepped, *, output_size):
    """token_ids: (S, B) int32. Returns (B, output_size) float32."""
    S, B = token_ids.shape
    proj, whh, ghb = prepped["proj"], prepped["whh"], prepped["ghb"]
    fcw, fcb = prepped["fcw"], prepped["fcb"]

    V_pad, G_pad = proj.shape
    H = whh.shape[0]
    O_pad = fcw.shape[1]

    SUBLANE = 8
    B_pad = max(SUBLANE, ((B + SUBLANE - 1) // SUBLANE) * SUBLANE)

    # Only per-call prep: pad the (tiny) int32 id matrix to the sublane width
    # and flatten time-major.  Padded rows use id 0 (valid row, results sliced off).
    ids = jnp.zeros((S, B_pad), jnp.int32).at[:, :B].set(token_ids.astype(jnp.int32))
    ids = ids.reshape(S * B_pad, 1)

    grid_spec = pltpu.PrefetchScalarGridSpec(
        num_scalar_prefetch=0,
        grid=(1,),  # recurrence fully in-kernel
        # TODO(synk): for large batches add a leading B tile axis marked
        # "parallel" so v7x's two TensorCores split the batch.
        in_specs=[
            pl.BlockSpec((S * B_pad, 1), lambda i: (0, 0)),     # token ids
            pl.BlockSpec((V_pad, G_pad), lambda i: (0, 0)),     # proj table
            pl.BlockSpec((H, G_pad), lambda i: (0, 0)),         # W_hh^T (bf16)
            pl.BlockSpec((1, G_pad), lambda i: (0, 0)),         # gh bias
            pl.BlockSpec((H, O_pad), lambda i: (0, 0)),         # fc weight^T (bf16)
            pl.BlockSpec((1, O_pad), lambda i: (0, 0)),         # fc bias
        ],
        out_specs=pl.BlockSpec((B_pad, O_pad), lambda i: (0, 0)),
        scratch_shapes=[pltpu.VMEM((S * B_pad, G_pad), jnp.float32)],
    )

    out_pad = pl.pallas_call(
        emogru_kernel,
        out_shape=jax.ShapeDtypeStruct((B_pad, O_pad), jnp.float32),
        grid_spec=grid_spec,
        compiler_params=pltpu.CompilerParams(
            dimension_semantics=("arbitrary",)),
    )(ids, proj, whh, ghb, fcw, fcb)

    return out_pad[:B, :output_size]


def emogru_reference(token_ids, params):
    """Pure-JAX f32 reference of the PyTorch forward (eval mode)."""
    emb = jnp.take(params["embedding"], token_ids, axis=0).astype(jnp.float32)
    H = params["w_hh"].shape[1]
    w_ih_t = params["w_ih"].T
    w_hh_t = params["w_hh"].T
    b_ih = params["b_ih"]
    b_hh = params["b_hh"]

    def step(h, x_t):
        gi = x_t @ w_ih_t + b_ih
        gh = h @ w_hh_t + b_hh
        r = jax.nn.sigmoid(gi[:, :H] + gh[:, :H])
        z = jax.nn.sigmoid(gi[:, H:2 * H] + gh[:, H:2 * H])
        n = jnp.tanh(gi[:, 2 * H:] + r * gh[:, 2 * H:])
        h_new = (1.0 - z) * n + z * h
        return h_new, None

    B = token_ids.shape[1]
    h0 = jnp.zeros((B, H), jnp.float32)
    h_last, _ = jax.lax.scan(step, h0, emb)
    return h_last @ params["fc_w"].T + params["fc_b"]


def make_params(key, vocab_size, embedding_dim, hidden_units, output_size):
    ks = jax.random.split(key, 7)
    scale = 1.0 / jnp.sqrt(hidden_units)
    return {
        "embedding": jax.random.normal(ks[0], (vocab_size, embedding_dim), jnp.float32),
        "w_ih": jax.random.uniform(ks[1], (3 * hidden_units, embedding_dim),
                                   jnp.float32, -scale, scale),
        "w_hh": jax.random.uniform(ks[2], (3 * hidden_units, hidden_units),
                                   jnp.float32, -scale, scale),
        "b_ih": jax.random.uniform(ks[3], (3 * hidden_units,), jnp.float32, -scale, scale),
        "b_hh": jax.random.uniform(ks[4], (3 * hidden_units,), jnp.float32, -scale, scale),
        "fc_w": jax.random.uniform(ks[5], (output_size, hidden_units),
                                   jnp.float32, -scale, scale),
        "fc_b": jax.random.uniform(ks[6], (output_size,), jnp.float32, -scale, scale),
    }


if __name__ == "__main__":
    # Small shapes consistent with the module.
    vocab_size, embedding_dim, hidden_units, output_size = 50, 32, 32, 6
    seq_len, batch = 8, 4

    key = jax.random.PRNGKey(0)
    pkey, xkey = jax.random.split(key)
    params = make_params(pkey, vocab_size, embedding_dim, hidden_units, output_size)
    prepped = prepare_params(params)   # one-time preprocessing (off the hot path)

    # token ids, seq-first (S, B) as PyTorch nn.GRU default expects
    x = jax.random.randint(xkey, (seq_len, batch), 0, vocab_size, dtype=jnp.int32)

    out = emogru_forward(x, prepped, output_size=output_size)
    out = jax.block_until_ready(out)

    ref = emogru_reference(x, params)
    assert out.shape == (batch, output_size)
    # Tolerance relaxed vs. pure-f32 because the recurrent and fc matmuls use
    # bf16 MXU operands (f32 accumulation).
    assert jnp.allclose(out, ref, atol=2e-2, rtol=2e-2), "mismatch vs reference"

    print("KERNEL_OK")
</pallas_src>

<mosaic_0001>
module attributes {stable_mosaic.version = 11 : i64} {
  func.func @emogru_kernel(%arg0: i32, %arg1: memref<64x1xi32, #tpu.memory_space<vmem>>, %arg2: memref<56x128xf32, #tpu.memory_space<vmem>>, %arg3: memref<32x128xbf16, #tpu.memory_space<vmem>>, %arg4: memref<1x128xf32, #tpu.memory_space<vmem>>, %arg5: memref<32x128xbf16, #tpu.memory_space<vmem>>, %arg6: memref<1x128xf32, #tpu.memory_space<vmem>>, %arg7: memref<8x128xf32, #tpu.memory_space<vmem>>, %arg8: memref<64x128xf32, #tpu.memory_space<vmem>>) attributes {dimension_semantics = [#tpu.dimension_semantics<arbitrary>], iteration_bounds = array<i64: 1>, scalar_prefetch = 0 : i64, scratch_operands = 1 : i64, tpu.core_type = #tpu.core_type<tc>, window_params = [{pipeline_mode = #tpu.pipeline_mode<synchronous>, transform_indices = @transform_0, window_bounds = array<i64: 64, 1>}, {pipeline_mode = #tpu.pipeline_mode<synchronous>, transform_indices = @transform_1, window_bounds = array<i64: 56, 128>}, {pipeline_mode = #tpu.pipeline_mode<synchronous>, transform_indices = @transform_2, window_bounds = array<i64: 32, 128>}, {pipeline_mode = #tpu.pipeline_mode<synchronous>, transform_indices = @transform_3, window_bounds = array<i64: 1, 128>}, {pipeline_mode = #tpu.pipeline_mode<synchronous>, transform_indices = @transform_4, window_bounds = array<i64: 32, 128>}, {pipeline_mode = #tpu.pipeline_mode<synchronous>, transform_indices = @transform_5, window_bounds = array<i64: 1, 128>}, {pipeline_mode = #tpu.pipeline_mode<synchronous>, transform_indices = @transform_6, window_bounds = array<i64: 8, 128>}]} {
    %c0 = arith.constant 0 : index
    %c0_0 = arith.constant 0 : index
    %0 = vector.load %arg1[%c0, %c0_0] : memref<64x1xi32, #tpu.memory_space<vmem>>, vector<64x1xi32>
    %1 = tpu.iota {dimensions = array<i32: 1>} : vector<64x56xi32>
    %2 = vector.broadcast %0 : vector<64x1xi32> to vector<64x56xi32>
    %3 = arith.cmpi eq, %1, %2 : vector<64x56xi32>
    %4 = arith.extui %3 : vector<64x56xi1> to vector<64x56xi32>
    %5 = arith.sitofp %4 : vector<64x56xi32> to vector<64x56xf32>
    %c0_1 = arith.constant 0 : index
    %c0_2 = arith.constant 0 : index
    %6 = vector.load %arg2[%c0_1, %c0_2] : memref<56x128xf32, #tpu.memory_space<vmem>>, vector<56x128xf32>
    %cst = arith.constant dense<0.000000e+00> : vector<64x128xf32>
    %7 = tpu.matmul %5, %6, %cst {dimension_numbers = #tpu.dot_dimension_numbers<[1], [0], [0], [1], [0, 0, 1, 1], [], []>} : vector<64x56xf32>, vector<56x128xf32>, vector<64x128xf32> -> vector<64x128xf32>
    %c0_3 = arith.constant 0 : index
    %c0_4 = arith.constant 0 : index
    %8 = vector.load %arg8[%c0_3, %c0_4] : memref<64x128xf32, #tpu.memory_space<vmem>>, vector<64x128xf32>
    tpu.vector_store %arg8[%c0_3, %c0_4], %7 {strides = array<i32>} : memref<64x128xf32, #tpu.memory_space<vmem>>, vector<64x128xf32>,
    %c0_5 = arith.constant 0 : index
    %c0_6 = arith.constant 0 : index
    %9 = vector.load %arg3[%c0_5, %c0_6] : memref<32x128xbf16, #tpu.memory_space<vmem>>, vector<32x128xbf16>
    %c0_7 = arith.constant 0 : index
    %c0_8 = arith.constant 0 : index
    %10 = vector.load %arg4[%c0_7, %c0_8] : memref<1x128xf32, #tpu.memory_space<vmem>>, vector<1x128xf32>
    %11 = vector.shape_cast %10 : vector<1x128xf32> to vector<1x128xf32>
    %12 = vector.broadcast %11 : vector<1x128xf32> to vector<8x128xf32>
    %cst_9 = arith.constant 0.000000e+00 : f32
    %13 = vector.broadcast %cst_9 : f32 to vector<8x32xf32>
    %c0_i32 = arith.constant 0 : i32
    %c8_i32 = arith.constant 8 : i32
    %14 = arith.muli %c0_i32, %c8_i32 : i32
    %15 = tpu.assume_multiple %14, 8 : i32
    %16 = arith.index_cast %15 : i32 to index
    %c0_10 = arith.constant 0 : index
    %17 = vector.load %arg8[%16, %c0_10] : memref<64x128xf32, #tpu.memory_space<vmem>>, vector<8x128xf32>
    %18 = arith.truncf %13 : vector<8x32xf32> to vector<8x32xbf16>
    %cst_11 = arith.constant dense<0.000000e+00> : vector<8x128xf32>
    %19 = tpu.matmul %18, %9, %cst_11 {dimension_numbers = #tpu.dot_dimension_numbers<[1], [0], [0], [1], [0, 0, 1, 1], [], []>} : vector<8x32xbf16>, vector<32x128xbf16>, vector<8x128xf32> -> vector<8x128xf32>
    %20 = arith.addf %19, %12 : vector<8x128xf32>
    %21 = vector.extract_strided_slice %17 {offsets = [0, 0], sizes = [8, 64], strides = [1, 1]} : vector<8x128xf32> to vector<8x64xf32>
    %22 = vector.extract_strided_slice %20 {offsets = [0, 0], sizes = [8, 64], strides = [1, 1]} : vector<8x128xf32> to vector<8x64xf32>
    %23 = arith.addf %21, %22 : vector<8x64xf32>
    %24 = arith.negf %23 : vector<8x64xf32>
    %25 = math.exp %24 : vector<8x64xf32>
    %cst_12 = arith.constant 1.000000e+00 : f32
    %26 = vector.broadcast %cst_12 : f32 to vector<8x64xf32>
    %27 = arith.addf %26, %25 : vector<8x64xf32>
    %28 = arith.divf %26, %27 : vector<8x64xf32>
    %29 = vector.extract_strided_slice %28 {offsets = [0, 0], sizes = [8, 32], strides = [1, 1]} : vector<8x64xf32> to vector<8x32xf32>
    %30 = vector.extract_strided_slice %28 {offsets = [0, 32], sizes = [8, 32], strides = [1, 1]} : vector<8x64xf32> to vector<8x32xf32>
    %31 = vector.extract_strided_slice %17 {offsets = [0, 64], sizes = [8, 32], strides = [1, 1]} : vector<8x128xf32> to vector<8x32xf32>
    %32 = vector.extract_strided_slice %20 {offsets = [0, 64], sizes = [8, 32], strides = [1, 1]} : vector<8x128xf32> to vector<8x32xf32>
    %33 = arith.mulf %29, %32 : vector<8x32xf32>
    %34 = arith.addf %31, %33 : vector<8x32xf32>
    %35 = math.tanh %34 : vector<8x32xf32>
    %cst_13 = arith.constant 1.000000e+00 : f32
    %36 = vector.broadcast %cst_13 : f32 to vector<8x32xf32>
    %37 = arith.subf %36, %30 : vector<8x32xf32>
    %38 = arith.mulf %37, %35 : vector<8x32xf32>
    %39 = arith.mulf %30, %13 : vector<8x32xf32>
    %40 = arith.addf %38, %39 : vector<8x32xf32>
    %c1_i32 = arith.constant 1 : i32
    %c8_i32_14 = arith.constant 8 : i32
    %41 = arith.muli %c1_i32, %c8_i32_14 : i32
    %42 = tpu.assume_multiple %41, 8 : i32
    %43 = arith.index_cast %42 : i32 to index
    %c0_15 = arith.constant 0 : index
    %44 = vector.load %arg8[%43, %c0_15] : memref<64x128xf32, #tpu.memory_space<vmem>>, vector<8x128xf32>
    %45 = arith.truncf %40 : vector<8x32xf32> to vector<8x32xbf16>
    %cst_16 = arith.constant dense<0.000000e+00> : vector<8x128xf32>
    %46 = tpu.matmul %45, %9, %cst_16 {dimension_numbers = #tpu.dot_dimension_numbers<[1], [0], [0], [1], [0, 0, 1, 1], [], []>} : vector<8x32xbf16>, vector<32x128xbf16>, vector<8x128xf32> -> vector<8x128xf32>
    %47 = arith.addf %46, %12 : vector<8x128xf32>
    %48 = vector.extract_strided_slice %44 {offsets = [0, 0], sizes = [8, 64], strides = [1, 1]} : vector<8x128xf32> to vector<8x64xf32>
    %49 = vector.extract_strided_slice %47 {offsets = [0, 0], sizes = [8, 64], strides = [1, 1]} : vector<8x128xf32> to vector<8x64xf32>
    %50 = arith.addf %48, %49 : vector<8x64xf32>
    %51 = arith.negf %50 : vector<8x64xf32>
    %52 = math.exp %51 : vector<8x64xf32>
    %cst_17 = arith.constant 1.000000e+00 : f32
    %53 = vector.broadcast %cst_17 : f32 to vector<8x64xf32>
    %54 = arith.addf %53, %52 : vector<8x64xf32>
    %55 = arith.divf %53, %54 : vector<8x64xf32>
    %56 = vector.extract_strided_slice %55 {offsets = [0, 0], sizes = [8, 32], strides = [1, 1]} : vector<8x64xf32> to vector<8x32xf32>
    %57 = vector.extract_strided_slice %55 {offsets = [0, 32], sizes = [8, 32], strides = [1, 1]} : vector<8x64xf32> to vector<8x32xf32>
    %58 = vector.extract_strided_slice %44 {offsets = [0, 64], sizes = [8, 32], strides = [1, 1]} : vector<8x128xf32> to vector<8x32xf32>
    %59 = vector.extract_strided_slice %47 {offsets = [0, 64], sizes = [8, 32], strides = [1, 1]} : vector<8x128xf32> to vector<8x32xf32>
    %60 = arith.mulf %56, %59 : vector<8x32xf32>
    %61 = arith.addf %58, %60 : vector<8x32xf32>
    %62 = math.tanh %61 : vector<8x32xf32>
    %cst_18 = arith.constant 1.000000e+00 : f32
    %63 = vector.broadcast %cst_18 : f32 to vector<8x32xf32>
    %64 = arith.subf %63, %57 : vector<8x32xf32>
    %65 = arith.mulf %64, %62 : vector<8x32xf32>
    %66 = arith.mulf %57, %40 : vector<8x32xf32>
    %67 = arith.addf %65, %66 : vector<8x32xf32>
    %c2_i32 = arith.constant 2 : i32
    %c8_i32_19 = arith.constant 8 : i32
    %68 = arith.muli %c2_i32, %c8_i32_19 : i32
    %69 = tpu.assume_multiple %68, 8 : i32
    %70 = arith.index_cast %69 : i32 to index
    %c0_20 = arith.constant 0 : index
    %71 = vector.load %arg8[%70, %c0_20] : memref<64x128xf32, #tpu.memory_space<vmem>>, vector<8x128xf32>
    %72 = arith.truncf %67 : vector<8x32xf32> to vector<8x32xbf16>
    %cst_21 = arith.constant dense<0.000000e+00> : vector<8x128xf32>
    %73 = tpu.matmul %72, %9, %cst_21 {dimension_numbers = #tpu.dot_dimension_numbers<[1], [0], [0], [1], [0, 0, 1, 1], [], []>} : vector<8x32xbf16>, vector<32x128xbf16>, vector<8x128xf32> -> vector<8x128xf32>
    %74 = arith.addf %73, %12 : vector<8x128xf32>
    %75 = vector.extract_strided_slice %71 {offsets = [0, 0], sizes = [8, 64], strides = [1, 1]} : vector<8x128xf32> to vector<8x64xf32>
    %76 = vector.extract_strided_slice %74 {offsets = [0, 0], sizes = [8, 64], strides = [1, 1]} : vector<8x128xf32> to vector<8x64xf32>
    %77 = arith.addf %75, %76 : vector<8x64xf32>
    %78 = arith.negf %77 : vector<8x64xf32>
    %79 = math.exp %78 : vector<8x64xf32>
    %cst_22 = arith.constant 1.000000e+00 : f32
    %80 = vector.broadcast %cst_22 : f32 to vector<8x64xf32>
    %81 = arith.addf %80, %79 : vector<8x64xf32>
    %82 = arith.divf %80, %81 : vector<8x64xf32>
    %83 = vector.extract_strided_slice %82 {offsets = [0, 0], sizes = [8, 32], strides = [1, 1]} : vector<8x64xf32> to vector<8x32xf32>
    %84 = vector.extract_strided_slice %82 {offsets = [0, 32], sizes = [8, 32], strides = [1, 1]} : vector<8x64xf32> to vector<8x32xf32>
    %85 = vector.extract_strided_slice %71 {offsets = [0, 64], sizes = [8, 32], strides = [1, 1]} : vector<8x128xf32> to vector<8x32xf32>
    %86 = vector.extract_strided_slice %74 {offsets = [0, 64], sizes = [8, 32], strides = [1, 1]} : vector<8x128xf32> to vector<8x32xf32>
    %87 = arith.mulf %83, %86 : vector<8x32xf32>
    %88 = arith.addf %85, %87 : vector<8x32xf32>
    %89 = math.tanh %88 : vector<8x32xf32>
    %cst_23 = arith.constant 1.000000e+00 : f32
    %90 = vector.broadcast %cst_23 : f32 to vector<8x32xf32>
    %91 = arith.subf %90, %84 : vector<8x32xf32>
    %92 = arith.mulf %91, %89 : vector<8x32xf32>
    %93 = arith.mulf %84, %67 : vector<8x32xf32>
    %94 = arith.addf %92, %93 : vector<8x32xf32>
    %c3_i32 = arith.constant 3 : i32
    %c8_i32_24 = arith.constant 8 : i32
    %95 = arith.muli %c3_i32, %c8_i32_24 : i32
    %96 = tpu.assume_multiple %95, 8 : i32
    %97 = arith.index_cast %96 : i32 to index
    %c0_25 = arith.constant 0 : index
    %98 = vector.load %arg8[%97, %c0_25] : memref<64x128xf32, #tpu.memory_space<vmem>>, vector<8x128xf32>
    %99 = arith.truncf %94 : vector<8x32xf32> to vector<8x32xbf16>
    %cst_26 = arith.constant dense<0.000000e+00> : vector<8x128xf32>
    %100 = tpu.matmul %99, %9, %cst_26 {dimension_numbers = #tpu.dot_dimension_numbers<[1], [0], [0], [1], [0, 0, 1, 1], [], []>} : vector<8x32xbf16>, vector<32x128xbf16>, vector<8x128xf32> -> vector<8x128xf32>
    %101 = arith.addf %100, %12 : vector<8x128xf32>
    %102 = vector.extract_strided_slice %98 {offsets = [0, 0], sizes = [8, 64], strides = [1, 1]} : vector<8x128xf32> to vector<8x64xf32>
    %103 = vector.extract_strided_slice %101 {offsets = [0, 0], sizes = [8, 64], strides = [1, 1]} : vector<8x128xf32> to vector<8x64xf32>
    %104 = arith.addf %102, %103 : vector<8x64xf32>
    %105 = arith.negf %104 : vector<8x64xf32>
    %106 = math.exp %105 : vector<8x64xf32>
    %cst_27 = arith.constant 1.000000e+00 : f32
    %107 = vector.broadcast %cst_27 : f32 to vector<8x64xf32>
    %108 = arith.addf %107, %106 : vector<8x64xf32>
    %109 = arith.divf %107, %108 : vector<8x64xf32>
    %110 = vector.extract_strided_slice %109 {offsets = [0, 0], sizes = [8, 32], strides = [1, 1]} : vector<8x64xf32> to vector<8x32xf32>
    %111 = vector.extract_strided_slice %109 {offsets = [0, 32], sizes = [8, 32], strides = [1, 1]} : vector<8x64xf32> to vector<8x32xf32>
    %112 = vector.extract_strided_slice %98 {offsets = [0, 64], sizes = [8, 32], strides = [1, 1]} : vector<8x128xf32> to vector<8x32xf32>
    %113 = vector.extract_strided_slice %101 {offsets = [0, 64], sizes = [8, 32], strides = [1, 1]} : vector<8x128xf32> to vector<8x32xf32>
    %114 = arith.mulf %110, %113 : vector<8x32xf32>
    %115 = arith.addf %112, %114 : vector<8x32xf32>
    %116 = math.tanh %115 : vector<8x32xf32>
    %cst_28 = arith.constant 1.000000e+00 : f32
    %117 = vector.broadcast %cst_28 : f32 to vector<8x32xf32>
    %118 = arith.subf %117, %111 : vector<8x32xf32>
    %119 = arith.mulf %118, %116 : vector<8x32xf32>
    %120 = arith.mulf %111, %94 : vector<8x32xf32>
    %121 = arith.addf %119, %120 : vector<8x32xf32>
    %c4_i32 = arith.constant 4 : i32
    %c8_i32_29 = arith.constant 8 : i32
    %122 = arith.muli %c4_i32, %c8_i32_29 : i32
    %123 = tpu.assume_multiple %122, 8 : i32
    %124 = arith.index_cast %123 : i32 to index
    %c0_30 = arith.constant 0 : index
    %125 = vector.load %arg8[%124, %c0_30] : memref<64x128xf32, #tpu.memory_space<vmem>>, vector<8x128xf32>
    %126 = arith.truncf %121 : vector<8x32xf32> to vector<8x32xbf16>
    %cst_31 = arith.constant dense<0.000000e+00> : vector<8x128xf32>
    %127 = tpu.matmul %126, %9, %cst_31 {dimension_numbers = #tpu.dot_dimension_numbers<[1], [0], [0], [1], [0, 0, 1, 1], [], []>} : vector<8x32xbf16>, vector<32x128xbf16>, vector<8x128xf32> -> vector<8x128xf32>
    %128 = arith.addf %127, %12 : vector<8x128xf32>
    %129 = vector.extract_strided_slice %125 {offsets = [0, 0], sizes = [8, 64], strides = [1, 1]} : vector<8x128xf32> to vector<8x64xf32>
    %130 = vector.extract_strided_slice %128 {offsets = [0, 0], sizes = [8, 64], strides = [1, 1]} : vector<8x128xf32> to vector<8x64xf32>
    %131 = arith.addf %129, %130 : vector<8x64xf32>
    %132 = arith.negf %131 : vector<8x64xf32>
    %133 = math.exp %132 : vector<8x64xf32>
    %cst_32 = arith.constant 1.000000e+00 : f32
    %134 = vector.broadcast %cst_32 : f32 to vector<8x64xf32>
    %135 = arith.addf %134, %133 : vector<8x64xf32>
    %136 = arith.divf %134, %135 : vector<8x64xf32>
    %137 = vector.extract_strided_slice %136 {offsets = [0, 0], sizes = [8, 32], strides = [1, 1]} : vector<8x64xf32> to vector<8x32xf32>
    %138 = vector.extract_strided_slice %136 {offsets = [0, 32], sizes = [8, 32], strides = [1, 1]} : vector<8x64xf32> to vector<8x32xf32>
    %139 = vector.extract_strided_slice %125 {offsets = [0, 64], sizes = [8, 32], strides = [1, 1]} : vector<8x128xf32> to vector<8x32xf32>
    %140 = vector.extract_strided_slice %128 {offsets = [0, 64], sizes = [8, 32], strides = [1, 1]} : vector<8x128xf32> to vector<8x32xf32>
    %141 = arith.mulf %137, %140 : vector<8x32xf32>
    %142 = arith.addf %139, %141 : vector<8x32xf32>
    %143 = math.tanh %142 : vector<8x32xf32>
    %cst_33 = arith.constant 1.000000e+00 : f32
    %144 = vector.broadcast %cst_33 : f32 to vector<8x32xf32>
    %145 = arith.subf %144, %138 : vector<8x32xf32>
    %146 = arith.mulf %145, %143 : vector<8x32xf32>
    %147 = arith.mulf %138, %121 : vector<8x32xf32>
    %148 = arith.addf %146, %147 : vector<8x32xf32>
    %c5_i32 = arith.constant 5 : i32
    %c8_i32_34 = arith.constant 8 : i32
    %149 = arith.muli %c5_i32, %c8_i32_34 : i32
    %150 = tpu.assume_multiple %149, 8 : i32
    %151 = arith.index_cast %150 : i32 to index
    %c0_35 = arith.constant 0 : index
    %152 = vector.load %arg8[%151, %c0_35] : memref<64x128xf32, #tpu.memory_space<vmem>>, vector<8x128xf32>
    %153 = arith.truncf %148 : vector<8x32xf32> to vector<8x32xbf16>
    %cst_36 = arith.constant dense<0.000000e+00> : vector<8x128xf32>
    %154 = tpu.matmul %153, %9, %cst_36 {dimension_numbers = #tpu.dot_dimension_numbers<[1], [0], [0], [1], [0, 0, 1, 1], [], []>} : vector<8x32xbf16>, vector<32x128xbf16>, vector<8x128xf32> -> vector<8x128xf32>
    %155 = arith.addf %154, %12 : vector<8x128xf32>
    %156 = vector.extract_strided_slice %152 {offsets = [0, 0], sizes = [8, 64], strides = [1, 1]} : vector<8x128xf32> to vector<8x64xf32>
    %157 = vector.extract_strided_slice %155 {offsets = [0, 0], sizes = [8, 64], strides = [1, 1]} : vector<8x128xf32> to vector<8x64xf32>
    %158 = arith.addf %156, %157 : vector<8x64xf32>
    %159 = arith.negf %158 : vector<8x64xf32>
    %160 = math.exp %159 : vector<8x64xf32>
    %cst_37 = arith.constant 1.000000e+00 : f32
    %161 = vector.broadcast %cst_37 : f32 to vector<8x64xf32>
    %162 = arith.addf %161, %160 : vector<8x64xf32>
    %163 = arith.divf %161, %162 : vector<8x64xf32>
    %164 = vector.extract_strided_slice %163 {offsets = [0, 0], sizes = [8, 32], strides = [1, 1]} : vector<8x64xf32> to vector<8x32xf32>
    %165 = vector.extract_strided_slice %163 {offsets = [0, 32], sizes = [8, 32], strides = [1, 1]} : vector<8x64xf32> to vector<8x32xf32>
    %166 = vector.extract_strided_slice %152 {offsets = [0, 64], sizes = [8, 32], strides = [1, 1]} : vector<8x128xf32> to vector<8x32xf32>
    %167 = vector.extract_strided_slice %155 {offsets = [0, 64], sizes = [8, 32], strides = [1, 1]} : vector<8x128xf32> to vector<8x32xf32>
    %168 = arith.mulf %164, %167 : vector<8x32xf32>
    %169 = arith.addf %166, %168 : vector<8x32xf32>
    %170 = math.tanh %169 : vector<8x32xf32>
    %cst_38 = arith.constant 1.000000e+00 : f32
    %171 = vector.broadcast %cst_38 : f32 to vector<8x32xf32>
    %172 = arith.subf %171, %165 : vector<8x32xf32>
    %173 = arith.mulf %172, %170 : vector<8x32xf32>
    %174 = arith.mulf %165, %148 : vector<8x32xf32>
    %175 = arith.addf %173, %174 : vector<8x32xf32>
    %c6_i32 = arith.constant 6 : i32
    %c8_i32_39 = arith.constant 8 : i32
    %176 = arith.muli %c6_i32, %c8_i32_39 : i32
    %177 = tpu.assume_multiple %176, 8 : i32
    %178 = arith.index_cast %177 : i32 to index
    %c0_40 = arith.constant 0 : index
    %179 = vector.load %arg8[%178, %c0_40] : memref<64x128xf32, #tpu.memory_space<vmem>>, vector<8x128xf32>
    %180 = arith.truncf %175 : vector<8x32xf32> to vector<8x32xbf16>
    %cst_41 = arith.constant dense<0.000000e+00> : vector<8x128xf32>
    %181 = tpu.matmul %180, %9, %cst_41 {dimension_numbers = #tpu.dot_dimension_numbers<[1], [0], [0], [1], [0, 0, 1, 1], [], []>} : vector<8x32xbf16>, vector<32x128xbf16>, vector<8x128xf32> -> vector<8x128xf32>
    %182 = arith.addf %181, %12 : vector<8x128xf32>
    %183 = vector.extract_strided_slice %179 {offsets = [0, 0], sizes = [8, 64], strides = [1, 1]} : vector<8x128xf32> to vector<8x64xf32>
    %184 = vector.extract_strided_slice %182 {offsets = [0, 0], sizes = [8, 64], strides = [1, 1]} : vector<8x128xf32> to vector<8x64xf32>
    %185 = arith.addf %183, %184 : vector<8x64xf32>
    %186 = arith.negf %185 : vector<8x64xf32>
    %187 = math.exp %186 : vector<8x64xf32>
    %cst_42 = arith.constant 1.000000e+00 : f32
    %188 = vector.broadcast %cst_42 : f32 to vector<8x64xf32>
    %189 = arith.addf %188, %187 : vector<8x64xf32>
    %190 = arith.divf %188, %189 : vector<8x64xf32>
    %191 = vector.extract_strided_slice %190 {offsets = [0, 0], sizes = [8, 32], strides = [1, 1]} : vector<8x64xf32> to vector<8x32xf32>
    %192 = vector.extract_strided_slice %190 {offsets = [0, 32], sizes = [8, 32], strides = [1, 1]} : vector<8x64xf32> to vector<8x32xf32>
    %193 = vector.extract_strided_slice %179 {offsets = [0, 64], sizes = [8, 32], strides = [1, 1]} : vector<8x128xf32> to vector<8x32xf32>
    %194 = vector.extract_strided_slice %182 {offsets = [0, 64], sizes = [8, 32], strides = [1, 1]} : vector<8x128xf32> to vector<8x32xf32>
    %195 = arith.mulf %191, %194 : vector<8x32xf32>
    %196 = arith.addf %193, %195 : vector<8x32xf32>
    %197 = math.tanh %196 : vector<8x32xf32>
    %cst_43 = arith.constant 1.000000e+00 : f32
    %198 = vector.broadcast %cst_43 : f32 to vector<8x32xf32>
    %199 = arith.subf %198, %192 : vector<8x32xf32>
    %200 = arith.mulf %199, %197 : vector<8x32xf32>
    %201 = arith.mulf %192, %175 : vector<8x32xf32>
    %202 = arith.addf %200, %201 : vector<8x32xf32>
    %c7_i32 = arith.constant 7 : i32
    %c8_i32_44 = arith.constant 8 : i32
    %203 = arith.muli %c7_i32, %c8_i32_44 : i32
    %204 = tpu.assume_multiple %203, 8 : i32
    %205 = arith.index_cast %204 : i32 to index
    %c0_45 = arith.constant 0 : index
    %206 = vector.load %arg8[%205, %c0_45] : memref<64x128xf32, #tpu.memory_space<vmem>>, vector<8x128xf32>
    %207 = arith.truncf %202 : vector<8x32xf32> to vector<8x32xbf16>
    %cst_46 = arith.constant dense<0.000000e+00> : vector<8x128xf32>
    %208 = tpu.matmul %207, %9, %cst_46 {dimension_numbers = #tpu.dot_dimension_numbers<[1], [0], [0], [1], [0, 0, 1, 1], [], []>} : vector<8x32xbf16>, vector<32x128xbf16>, vector<8x128xf32> -> vector<8x128xf32>
    %209 = arith.addf %208, %12 : vector<8x128xf32>
    %210 = vector.extract_strided_slice %206 {offsets = [0, 0], sizes = [8, 64], strides = [1, 1]} : vector<8x128xf32> to vector<8x64xf32>
    %211 = vector.extract_strided_slice %209 {offsets = [0, 0], sizes = [8, 64], strides = [1, 1]} : vector<8x128xf32> to vector<8x64xf32>
    %212 = arith.addf %210, %211 : vector<8x64xf32>
    %213 = arith.negf %212 : vector<8x64xf32>
    %214 = math.exp %213 : vector<8x64xf32>
    %cst_47 = arith.constant 1.000000e+00 : f32
    %215 = vector.broadcast %cst_47 : f32 to vector<8x64xf32>
    %216 = arith.addf %215, %214 : vector<8x64xf32>
    %217 = arith.divf %215, %216 : vector<8x64xf32>
    %218 = vector.extract_strided_slice %217 {offsets = [0, 0], sizes = [8, 32], strides = [1, 1]} : vector<8x64xf32> to vector<8x32xf32>
    %219 = vector.extract_strided_slice %217 {offsets = [0, 32], sizes = [8, 32], strides = [1, 1]} : vector<8x64xf32> to vector<8x32xf32>
    %220 = vector.extract_strided_slice %206 {offsets = [0, 64], sizes = [8, 32], strides = [1, 1]} : vector<8x128xf32> to vector<8x32xf32>
    %221 = vector.extract_strided_slice %209 {offsets = [0, 64], sizes = [8, 32], strides = [1, 1]} : vector<8x128xf32> to vector<8x32xf32>
    %222 = arith.mulf %218, %221 : vector<8x32xf32>
    %223 = arith.addf %220, %222 : vector<8x32xf32>
    %224 = math.tanh %223 : vector<8x32xf32>
    %cst_48 = arith.constant 1.000000e+00 : f32
    %225 = vector.broadcast %cst_48 : f32 to vector<8x32xf32>
    %226 = arith.subf %225, %219 : vector<8x32xf32>
    %227 = arith.mulf %226, %224 : vector<8x32xf32>
    %228 = arith.mulf %219, %202 : vector<8x32xf32>
    %229 = arith.addf %227, %228 : vector<8x32xf32>
    %c8_i32_49 = arith.constant 8 : i32
    %230 = arith.truncf %229 : vector<8x32xf32> to vector<8x32xbf16>
    %c0_50 = arith.constant 0 : index
    %c0_51 = arith.constant 0 : index
    %231 = vector.load %arg5[%c0_50, %c0_51] : memref<32x128xbf16, #tpu.memory_space<vmem>>, vector<32x128xbf16>
    %cst_52 = arith.constant dense<0.000000e+00> : vector<8x128xf32>
    %232 = tpu.matmul %230, %231, %cst_52 {dimension_numbers = #tpu.dot_dimension_numbers<[1], [0], [0], [1], [0, 0, 1, 1], [], []>} : vector<8x32xbf16>, vector<32x128xbf16>, vector<8x128xf32> -> vector<8x128xf32>
    %c0_53 = arith.constant 0 : index
    %c0_54 = arith.constant 0 : index
    %233 = vector.load %arg6[%c0_53, %c0_54] : memref<1x128xf32, #tpu.memory_space<vmem>>, vector<1x128xf32>
    %234 = vector.broadcast %233 : vector<1x128xf32> to vector<8x128xf32>
    %235 = arith.addf %232, %234 : vector<8x128xf32>
    %c0_55 = arith.constant 0 : index
    %c0_56 = arith.constant 0 : index
    %236 = vector.load %arg7[%c0_55, %c0_56] : memref<8x128xf32, #tpu.memory_space<vmem>>, vector<8x128xf32>
    tpu.vector_store %arg7[%c0_55, %c0_56], %235 {strides = array<i32>} : memref<8x128xf32, #tpu.memory_space<vmem>>, vector<8x128xf32>,
    return
  }
  func.func @transform_0(%arg0: i32) -> (i32, i32) {
    %c0_i32 = arith.constant 0 : i32
    %c0_i32_0 = arith.constant 0 : i32
    %c0_i32_1 = arith.constant 0 : i32
    return %c0_i32, %c0_i32_0 : i32, i32
  }
  func.func @transform_1(%arg0: i32) -> (i32, i32) {
    %c0_i32 = arith.constant 0 : i32
    %c0_i32_0 = arith.constant 0 : i32
    %c0_i32_1 = arith.constant 0 : i32
    return %c0_i32, %c0_i32_0 : i32, i32
  }
  func.func @transform_2(%arg0: i32) -> (i32, i32) {
    %c0_i32 = arith.constant 0 : i32
    %c0_i32_0 = arith.constant 0 : i32
    %c0_i32_1 = arith.constant 0 : i32
    return %c0_i32, %c0_i32_0 : i32, i32
  }
  func.func @transform_3(%arg0: i32) -> (i32, i32) {
    %c0_i32 = arith.constant 0 : i32
    %c0_i32_0 = arith.constant 0 : i32
    %c0_i32_1 = arith.constant 0 : i32
    return %c0_i32, %c0_i32_0 : i32, i32
  }
  func.func @transform_4(%arg0: i32) -> (i32, i32) {
    %c0_i32 = arith.constant 0 : i32
    %c0_i32_0 = arith.constant 0 : i32
    %c0_i32_1 = arith.constant 0 : i32
    return %c0_i32, %c0_i32_0 : i32, i32
  }
  func.func @transform_5(%arg0: i32) -> (i32, i32) {
    %c0_i32 = arith.constant 0 : i32
    %c0_i32_0 = arith.constant 0 : i32
    %c0_i32_1 = arith.constant 0 : i32
    return %c0_i32, %c0_i32_0 : i32, i32
  }
  func.func @transform_6(%arg0: i32) -> (i32, i32) {
    %c0_i32 = arith.constant 0 : i32
    %c0_i32_0 = arith.constant 0 : i32
    %c0_i32_1 = arith.constant 0 : i32
    return %c0_i32, %c0_i32_0 : i32, i32
  }
}

</mosaic_0001>

<llo_original>
// kernel: emogru_forward.1
$region0: #{emogru_forward.1}
  #allocation0 [shape = 'u32[]', space=smem, size = 0x4, offset = 0x4, fixed_abs, tag = 'smem constant byte address 0x4 - core index']
  #allocation1 [shape = 'u32[144,128]{1,0:T(1,128)}', space=vmem, size = 0x12000, scoped, tag = 'internal scratch']
  #allocation2 [shape = 'f32[64,128]{1,0:T(8,128)}', space=vmem, size = 0x8000, scoped, tag = 'scratch operand']
  %s0 = inlined_call_operand.vmem [shape: s32[64,1], index: 0, kind: input, shape index: {}]
  %s1 = inlined_call_operand.vmem [shape: f32[56,128], index: 1, kind: input, shape index: {}]
  %s2 = inlined_call_operand.vmem [shape: bf16[32,128], index: 2, kind: input, shape index: {}]
  %s3 = inlined_call_operand.vmem [shape: f32[1,128], index: 3, kind: input, shape index: {}]
  %s4 = inlined_call_operand.vmem [shape: bf16[32,128], index: 4, kind: input, shape index: {}]
  %s5 = inlined_call_operand.vmem [shape: f32[1,128], index: 5, kind: input, shape index: {}]
  %s6 = inlined_call_operand.vmem [shape: f32[8,128], index: 6, kind: output, shape index: {}]
  %s7 = sld [smem:[#allocation0]]
  $region34: #{emogru_forward.1} parent=0
    _
  %s9 = ssub.s32 1, %s7
  %s10 = scalar_select 0, %s9, %s7
  // Predicated region
  $region2: #{emogru_forward.1} parent=0 // pred_check
    _
  $region3: #{emogru_forward.1} parent=0 // pred_check_branch
    %12 = sbr.rel (0) target = $region5
  $region4: #{emogru_forward.1} parent=0 // pred_region
    _
  $region5: #{emogru_forward.1} parent=0 // pred_fallthru
    _
  // Predicated region
  $region6: #{emogru_forward.1} parent=0 // pred_check
    _
  $region7: #{emogru_forward.1} parent=0 // pred_check_branch
    %14 = sbr.rel (0) target = $region9
  $region8: #{emogru_forward.1} parent=0 // pred_region
    _
  $region9: #{emogru_forward.1} parent=0 // pred_fallthru
    _
  // Predicated region
  $region10: #{emogru_forward.1} parent=0 // pred_check
    _
  $region11: #{emogru_forward.1} parent=0 // pred_check_branch
    %16 = sbr.rel (0) target = $region13
  $region12: #{emogru_forward.1} parent=0 // pred_region
    _
  $region13: #{emogru_forward.1} parent=0 // pred_fallthru
    _
  // Predicated region
  $region14: #{emogru_forward.1} parent=0 // pred_check
    _
  $region15: #{emogru_forward.1} parent=0 // pred_check_branch
    %18 = sbr.rel (0) target = $region17
  $region16: #{emogru_forward.1} parent=0 // pred_region
    _
  $region17: #{emogru_forward.1} parent=0 // pred_fallthru
    _
  // Predicated region
  $region18: #{emogru_forward.1} parent=0 // pred_check
    _
  $region19: #{emogru_forward.1} parent=0 // pred_check_branch
    %20 = sbr.rel (0) target = $region21
  $region20: #{emogru_forward.1} parent=0 // pred_region
    _
  $region21: #{emogru_forward.1} parent=0 // pred_fallthru
    _
  // Predicated region
  $region22: #{emogru_forward.1} parent=0 // pred_check
    _
  $region23: #{emogru_forward.1} parent=0 // pred_check_branch
    %22 = sbr.rel (0) target = $region25
  $region24: #{emogru_forward.1} parent=0 // pred_region
    _
  $region25: #{emogru_forward.1} parent=0 // pred_fallthru
    _
  %v24 = vld [vmem:[%s0] sm:$0xff]
  %v25 = vld [vmem:[%s0 + $0x8] sm:$0xff]
  %v26 = vld [vmem:[%s0 + $0x10] sm:$0xff]
  %v27 = vld [vmem:[%s0 + $0x18] sm:$0xff]
  %v28 = vld [vmem:[%s0 + $0x20] sm:$0xff]
  %v29 = vld [vmem:[%s0 + $0x28] sm:$0xff]
  %v30 = vld [vmem:[%s0 + $0x30] sm:$0xff]
  %v31 = vld [vmem:[%s0 + $0x38] sm:$0xff]
  %v32 = vlaneseq
  %v33 = vand.u32 %v32, 127
  %34 = vset.pattern.permute.xlu0 0
  %35 = vperm.xlu0 %34, %v24
  %v36 = vpop.permute.xlu0 %35
  %37 = vset.pattern.permute.xlu0 0
  %38 = vperm.xlu0 %37, %v25
  %v39 = vpop.permute.xlu0 %38
  %40 = vset.pattern.permute.xlu0 0
  %41 = vperm.xlu0 %40, %v26
  %v42 = vpop.permute.xlu0 %41
  %43 = vset.pattern.permute.xlu0 0
  %44 = vperm.xlu0 %43, %v27
  %v45 = vpop.permute.xlu0 %44
  %46 = vset.pattern.permute.xlu0 0
  %47 = vperm.xlu0 %46, %v28
  %v48 = vpop.permute.xlu0 %47
  %49 = vset.pattern.permute.xlu0 0
  %50 = vperm.xlu0 %49, %v29
  %v51 = vpop.permute.xlu0 %50
  %52 = vset.pattern.permute.xlu0 0
  %53 = vperm.xlu0 %52, %v30
  %v54 = vpop.permute.xlu0 %53
  %55 = vset.pattern.permute.xlu0 0
  %56 = vperm.xlu0 %55, %v31
  %v57 = vpop.permute.xlu0 %56
  %vm58 = vcmp.eq.s32.totalorder %v33, %v36
  %vm59 = vcmp.eq.s32.totalorder %v33, %v39
  %vm60 = vcmp.eq.s32.totalorder %v33, %v42
  %vm61 = vcmp.eq.s32.totalorder %v33, %v45
  %vm62 = vcmp.eq.s32.totalorder %v33, %v48
  %vm63 = vcmp.eq.s32.totalorder %v33, %v51
  %vm64 = vcmp.eq.s32.totalorder %v33, %v54
  %vm65 = vcmp.eq.s32.totalorder %v33, %v57
  %v66 = vsel %vm58, 1, 0
  %v67 = vsel %vm59, 1, 0
  %v68 = vsel %vm60, 1, 0
  %v69 = vsel %vm61, 1, 0
  %v70 = vsel %vm62, 1, 0
  %v71 = vsel %vm63, 1, 0
  %v72 = vsel %vm64, 1, 0
  %v73 = vsel %vm65, 1, 0
  %v74 = vcvt.s32.f32 %v66
  %v75 = vcvt.s32.f32 %v67
  %v76 = vcvt.s32.f32 %v68
  %v77 = vcvt.s32.f32 %v69
  %v78 = vcvt.s32.f32 %v70
  %v79 = vcvt.s32.f32 %v71
  %v80 = vcvt.s32.f32 %v72
  %v81 = vcvt.s32.f32 %v73
  %v82 = vld [vmem:[%s1] sm:$0xff]
  %v83 = vld [vmem:[%s1 + $0x8] sm:$0xff]
  %v84 = vld [vmem:[%s1 + $0x10] sm:$0xff]
  %v85 = vld [vmem:[%s1 + $0x18] sm:$0xff]
  %v86 = vld [vmem:[%s1 + $0x20] sm:$0xff]
  %v87 = vld [vmem:[%s1 + $0x28] sm:$0xff]
  %v88 = vld [vmem:[%s1 + $0x30] sm:$0xff]
  %vm89 = vcmask 457728
  %v91 = vsel %vm89, %v74, 0
  %v94 = vsel %vm89, %v75, 0
  %v97 = vsel %vm89, %v76, 0
  %v100 = vsel %vm89, %v77, 0
  %v103 = vsel %vm89, %v78, 0
  %v106 = vsel %vm89, %v79, 0
  %v109 = vsel %vm89, %v80, 0
  %v112 = vsel %vm89, %v81, 0
  %114 = vmatprep.subr.mxu0 0.0
  %115 = vmatpush1.msra.mxu0 %v82
  %116 = vmatprep.subr.mxu0 0.0
  %117 = vmatpush1.msra.mxu0 %v83
  %118 = vmatprep.subr.mxu0 0.0
  %119 = vmatpush1.msra.mxu0 %v84
  %120 = vmatprep.subr.mxu0 0.0
  %121 = vmatpush1.msra.mxu0 %v85
  %122 = vmatprep.subr.mxu0 0.0
  %123 = vmatpush1.msra.mxu0 %v86
  %124 = vmatprep.subr.mxu0 0.0
  %125 = vmatpush1.msra.mxu0 %v87
  %126 = vmatprep.subr.mxu0 0.0
  %127 = vmatpush1.msra.mxu0 %v88
  %128 = vmatprep.subr.mxu0 0.0
  %129 = vmatpush1.msra.mxu0 0.0
  %130 = vmatprep.subr.mxu0 0.0
  %131 = vmatpush1.msra.mxu0 0.0
  %132 = vmatprep.subr.mxu0 0.0
  %133 = vmatpush1.msra.mxu0 0.0
  %134 = vmatprep.subr.mxu0 0.0
  %135 = vmatpush1.msra.mxu0 0.0
  %136 = vmatprep.subr.mxu0 0.0
  %137 = vmatpush1.msra.mxu0 0.0
  %138 = vmatprep.subr.mxu0 0.0
  %139 = vmatpush1.msra.mxu0 0.0
  %140 = vmatprep.subr.mxu0 0.0
  %141 = vmatpush1.msra.mxu0 0.0
  %142 = vmatprep.subr.mxu0 0.0
  %143 = vmatpush1.msra.mxu0 0.0
  %144 = vmatprep.subr.mxu0 0.0
  %145 = vmatpush1.msra.mxu0 0.0
  %146 = vmatprep.subr.mxu0 0.0
  %147 = vmatpush1.msra.mxu0 0.0
  %148 = vmatprep.subr.mxu0 0.0
  %149 = vmatpush1.msra.mxu0 0.0
  %150 = vmatprep.subr.mxu0 0.0
  %151 = vmatpush1.msra.mxu0 0.0
  %152 = vmatprep.subr.mxu0 0.0
  %153 = vmatpush1.msra.mxu0 0.0
  %154 = vmatprep.subr.mxu0 0.0
  %155 = vmatpush1.msra.mxu0 0.0
  %156 = vmatprep.subr.mxu0 0.0
  %157 = vmatpush1.msra.mxu0 0.0
  %158 = vmatprep.subr.mxu0 0.0
  %159 = vmatpush1.msra.mxu0 0.0
  %160 = vmatprep.subr.mxu0 0.0
  %161 = vmatpush1.msra.mxu0 0.0
  %162 = vmatprep.subr.mxu0 0.0
  %163 = vmatpush1.msra.mxu0 0.0
  %164 = vmatprep.subr.mxu0 0.0
  %165 = vmatpush1.msra.mxu0 0.0
  %166 = vmatprep.subr.mxu0 0.0
  %167 = vmatpush1.msra.mxu0 0.0
  %168 = vmatprep.subr.mxu0 0.0
  %169 = vmatpush1.msra.mxu0 0.0
  %170 = vmatprep.subr.mxu0 0.0
  %171 = vmatpush1.msra.mxu0 0.0
  %172 = vmatprep.subr.mxu0 0.0
  %173 = vmatpush1.msra.mxu0 0.0
  %174 = vmatprep.subr.mxu0 0.0
  %175 = vmatpush1.msra.mxu0 0.0
  %176 = vmatprep.subr.mxu0 0.0
  %177 = vmatpush1.msra.mxu0 0.0
  %178 = vmatprep.mubr.f32.mxu0 0.0
  %179 = vmatmul.mubr.f32.gmra.mrb[0].mxu0 %v91
  %v180 = vpop.f32.mrb[0].mxu0
  %v181 = vadd.f32 0.0, %v180
  %v182 = vpop.f32.mrb[0].mxu0
  %183 = vmatprep.mubr.f32.mxu0 0.0
  %184 = vmatmul.mubr.f32.gmra.mrb[0].mxu0 %v94
  %v185 = vpop.f32.mrb[0].mxu0
  %v186 = vadd.f32 0.0, %v185
  %v187 = vpop.f32.mrb[0].mxu0
  %188 = vmatprep.mubr.f32.mxu0 0.0
  %189 = vmatmul.mubr.f32.gmra.mrb[0].mxu0 %v97
  %v190 = vpop.f32.mrb[0].mxu0
  %v191 = vadd.f32 0.0, %v190
  %v192 = vpop.f32.mrb[0].mxu0
  %193 = vmatprep.mubr.f32.mxu0 0.0
  %194 = vmatmul.mubr.f32.gmra.mrb[0].mxu0 %v100
  %v195 = vpop.f32.mrb[0].mxu0
  %v196 = vadd.f32 0.0, %v195
  %v197 = vpop.f32.mrb[0].mxu0
  %198 = vmatprep.mubr.f32.mxu0 0.0
  %199 = vmatmul.mubr.f32.gmra.mrb[0].mxu0 %v103
  %v200 = vpop.f32.mrb[0].mxu0
  %v201 = vadd.f32 0.0, %v200
  %v202 = vpop.f32.mrb[0].mxu0
  %203 = vmatprep.mubr.f32.mxu0 0.0
  %204 = vmatmul.mubr.f32.gmra.mrb[0].mxu0 %v106
  %v205 = vpop.f32.mrb[0].mxu0
  %v206 = vadd.f32 0.0, %v205
  %v207 = vpop.f32.mrb[0].mxu0
  %208 = vmatprep.mubr.f32.mxu0 0.0
  %209 = vmatmul.mubr.f32.gmra.mrb[0].mxu0 %v109
  %v210 = vpop.f32.mrb[0].mxu0
  %v211 = vadd.f32 0.0, %v210
  %v212 = vpop.f32.mrb[0].mxu0
  %213 = vmatprep.mubr.f32.mxu0 0.0
  %214 = vmatmul.mubr.f32.gmra.mrb[0].mxu0 %v112
  %v215 = vpop.f32.mrb[0].mxu0
  %v216 = vadd.f32 0.0, %v215
  %v217 = vpop.f32.mrb[0].mxu0
  %218 = vdwg.mxu0
  %219 = vst [vmem:[#allocation2] sm:$0xff] %v181
  %220 = vst [vmem:[#allocation2 + $0x8] sm:$0xff] %v186
  %221 = vst [vmem:[#allocation2 + $0x10] sm:$0xff] %v191
  %222 = vst [vmem:[#allocation2 + $0x18] sm:$0xff] %v196
  %223 = vst [vmem:[#allocation2 + $0x20] sm:$0xff] %v201
  %224 = vst [vmem:[#allocation2 + $0x28] sm:$0xff] %v206
  %225 = vst [vmem:[#allocation2 + $0x30] sm:$0xff] %v211
  %226 = vst [vmem:[#allocation2 + $0x38] sm:$0xff] %v216
  %v227 = vld [vmem:[%s2] sm:$0xf]
  %v228 = vld [vmem:[%s2 + $0x4] sm:$0xf]
  %v229 = vld [vmem:[%s2 + $0x8] sm:$0xf]
  %v230 = vld [vmem:[%s2 + $0xc] sm:$0xf]
  %v231 = vld [vmem:[%s3] sm:$0x1]
  %v233 = vlaneseq
  %v234 = vshrl.u32 %v233, 7
  %v235 = vsub.s32 0, %v234
  %v236 = vrot.slane %v231, %v235
  %v238 = vld [vmem:[#allocation2] sm:$0xff]
  %v243 = vunpack.c.l.b16 %v227
  %v244 = vunpack.c.l.b16 %v228
  %v245 = vunpack.c.l.b16 %v229
  %v246 = vunpack.c.l.b16 %v230
  %v247 = vpack.c.b16 %v244, %v243
  %v248 = vpack.c.b16 %v246, %v245
  %vm251 = vcmask 261120
  %v253 = vsel %vm251, 0, 0
  %255 = vmatprep.subr.bf16.mxu0 0
  %256 = vmatpush1.bf16.msra.mxu0 %v247
  %257 = vmatprep.subr.bf16.mxu0 0
  %258 = vmatpush1.bf16.msra.mxu0 %v248
  %259 = vmatprep.subr.bf16.mxu0 0
  %260 = vmatpush1.bf16.msra.mxu0 0
  %261 = vmatprep.subr.bf16.mxu0 0
  %262 = vmatpush1.bf16.msra.mxu0 0
  %263 = vmatprep.subr.bf16.mxu0 0
  %264 = vmatpush1.bf16.msra.mxu0 0
  %265 = vmatprep.subr.bf16.mxu0 0
  %266 = vmatpush1.bf16.msra.mxu0 0
  %267 = vmatprep.subr.bf16.mxu0 0
  %268 = vmatpush1.bf16.msra.mxu0 0
  %269 = vmatprep.subr.bf16.mxu0 0
  %270 = vmatpush1.bf16.msra.mxu0 0
  %271 = vmatprep.subr.bf16.mxu0 0
  %272 = vmatpush1.bf16.msra.mxu0 0
  %273 = vmatprep.subr.bf16.mxu0 0
  %274 = vmatpush1.bf16.msra.mxu0 0
  %275 = vmatprep.subr.bf16.mxu0 0
  %276 = vmatpush1.bf16.msra.mxu0 0
  %277 = vmatprep.subr.bf16.mxu0 0
  %278 = vmatpush1.bf16.msra.mxu0 0
  %279 = vmatprep.subr.bf16.mxu0 0
  %280 = vmatpush1.bf16.msra.mxu0 0
  %281 = vmatprep.subr.bf16.mxu0 0
  %282 = vmatpush1.bf16.msra.mxu0 0
  %283 = vmatprep.subr.bf16.mxu0 0
  %284 = vmatpush1.bf16.msra.mxu0 0
  %285 = vmatprep.subr.bf16.mxu0 0
  %286 = vmatpush1.bf16.msra.mxu0 0
  %287 = vmatprep.mubr.bf16.mxu0 0
  %288 = vmatmul.mubr.bf16.gmra.mrb[0].mxu0 %v253
  %v289 = vpop.f32.mrb[0].mxu0
  %v290 = vadd.f32 %v236, %v289
  %v291 = vpop.f32.mrb[0].mxu0
  %v292 = vpop.f32.mrb[0].mxu0
  %v293 = vpop.f32.mrb[0].mxu0
  %294 = vdwg.mxu0
  %v295 = vadd.f32 %v238, %v290
  %v296 = vxor.u32 %v295, 2147483648
  %v297 = vmul.f32 %v296, 1.442695
  %v298 = vpow.pop %v297
  %v299 = vadd.f32 %v298, 1.0
  %v300 = vrcp.pop %v299
  %v301 = vmul.f32 1.0, %v300
  %303 = vrot.lane.b32.xlu0 %v290, 64
  %v304 = vpop.permute.xlu0 %303
  %v306 = vmul.f32 %v301, %v304
  %308 = vrot.lane.b32.xlu0 %v306, 64
  %v309 = vpop.permute.xlu0 %308
  %v311 = vadd.f32 %v238, %v309
  %v312 = vtanh.pop %v311
  %v313 = vsub.f32 1.0, %v301
  %315 = vrot.lane.b32.xlu0 %v312, 96
  %v316 = vpop.permute.xlu0 %315
  %v318 = vmul.f32 %v313, %v316
  %v319 = vmul.f32 %v301, 0.0
  %v320 = vadd.f32 %v318, %v319
  %s321 = scalar_lea.vmem [#allocation2], 8
  %v322 = vld [vmem:[%s321] sm:$0xff]
  %v323 = vpack.c.bf16 %v320, %v320
  %325 = vrot.lane.b32.xlu0 %v323, 96
  %v326 = vpop.permute.xlu0 %325
  %v328 = vsel %vm251, %v326, 0
  %330 = vmatprep.subr.bf16.mxu0 0
  %331 = vmatpush1.bf16.msra.mxu0 %v247
  %332 = vmatprep.subr.bf16.mxu0 0
  %333 = vmatpush1.bf16.msra.mxu0 %v248
  %334 = vmatprep.subr.bf16.mxu0 0
  %335 = vmatpush1.bf16.msra.mxu0 0
  %336 = vmatprep.subr.bf16.mxu0 0
  %337 = vmatpush1.bf16.msra.mxu0 0
  %338 = vmatprep.subr.bf16.mxu0 0
  %339 = vmatpush1.bf16.msra.mxu0 0
  %340 = vmatprep.subr.bf16.mxu0 0
  %341 = vmatpush1.bf16.msra.mxu0 0
  %342 = vmatprep.subr.bf16.mxu0 0
  %343 = vmatpush1.bf16.msra.mxu0 0
  %344 = vmatprep.subr.bf16.mxu0 0
  %345 = vmatpush1.bf16.msra.mxu0 0
  %346 = vmatprep.subr.bf16.mxu0 0
  %347 = vmatpush1.bf16.msra.mxu0 0
  %348 = vmatprep.subr.bf16.mxu0 0
  %349 = vmatpush1.bf16.msra.mxu0 0
  %350 = vmatprep.subr.bf16.mxu0 0
  %351 = vmatpush1.bf16.msra.mxu0 0
  %352 = vmatprep.subr.bf16.mxu0 0
  %353 = vmatpush1.bf16.msra.mxu0 0
  %354 = vmatprep.subr.bf16.mxu0 0
  %355 = vmatpush1.bf16.msra.mxu0 0
  %356 = vmatprep.subr.bf16.mxu0 0
  %357 = vmatpush1.bf16.msra.mxu0 0
  %358 = vmatprep.subr.bf16.mxu0 0
  %359 = vmatpush1.bf16.msra.mxu0 0
  %360 = vmatprep.subr.bf16.mxu0 0
  %361 = vmatpush1.bf16.msra.mxu0 0
  %362 = vmatprep.mubr.bf16.mxu0 0
  %363 = vmatmul.mubr.bf16.gmra.mrb[0].mxu0 %v328
  %v364 = vpop.f32.mrb[0].mxu0
  %v365 = vadd.f32 %v236, %v364
  %v366 = vpop.f32.mrb[0].mxu0
  %v367 = vpop.f32.mrb[0].mxu0
  %v368 = vpop.f32.mrb[0].mxu0
  %369 = vdwg.mxu0
  %v370 = vadd.f32 %v322, %v365
  %v371 = vxor.u32 %v370, 2147483648
  %v372 = vmul.f32 %v371, 1.442695
  %v373 = vpow.pop %v372
  %v374 = vadd.f32 %v373, 1.0
  %v375 = vrcp.pop %v374
  %v376 = vmul.f32 1.0, %v375
  %378 = vrot.lane.b32.xlu0 %v365, 64
  %v379 = vpop.permute.xlu0 %378
  %v381 = vmul.f32 %v376, %v379
  %383 = vrot.lane.b32.xlu0 %v381, 64
  %v384 = vpop.permute.xlu0 %383
  %v386 = vadd.f32 %v322, %v384
  %v387 = vtanh.pop %v386
  %v388 = vsub.f32 1.0, %v376
  %390 = vrot.lane.b32.xlu0 %v387, 96
  %v391 = vpop.permute.xlu0 %390
  %v393 = vmul.f32 %v388, %v391
  %v394 = vmul.f32 %v376, %v320
  %v395 = vadd.f32 %v393, %v394
  %s396 = scalar_lea.vmem [#allocation2], 16
  %v397 = vld [vmem:[%s396] sm:$0xff]
  %v398 = vpack.c.bf16 %v395, %v395
  %400 = vrot.lane.b32.xlu0 %v398, 96
  %v401 = vpop.permute.xlu0 %400
  %v403 = vsel %vm251, %v401, 0
  %405 = vmatprep.subr.bf16.mxu0 0
  %406 = vmatpush1.bf16.msra.mxu0 %v247
  %407 = vmatprep.subr.bf16.mxu0 0
  %408 = vmatpush1.bf16.msra.mxu0 %v248
  %409 = vmatprep.subr.bf16.mxu0 0
  %410 = vmatpush1.bf16.msra.mxu0 0
  %411 = vmatprep.subr.bf16.mxu0 0
  %412 = vmatpush1.bf16.msra.mxu0 0
  %413 = vmatprep.subr.bf16.mxu0 0
  %414 = vmatpush1.bf16.msra.mxu0 0
  %415 = vmatprep.subr.bf16.mxu0 0
  %416 = vmatpush1.bf16.msra.mxu0 0
  %417 = vmatprep.subr.bf16.mxu0 0
  %418 = vmatpush1.bf16.msra.mxu0 0
  %419 = vmatprep.subr.bf16.mxu0 0
  %420 = vmatpush1.bf16.msra.mxu0 0
  %421 = vmatprep.subr.bf16.mxu0 0
  %422 = vmatpush1.bf16.msra.mxu0 0
  %423 = vmatprep.subr.bf16.mxu0 0
  %424 = vmatpush1.bf16.msra.mxu0 0
  %425 = vmatprep.subr.bf16.mxu0 0
  %426 = vmatpush1.bf16.msra.mxu0 0
  %427 = vmatprep.subr.bf16.mxu0 0
  %428 = vmatpush1.bf16.msra.mxu0 0
  %429 = vmatprep.subr.bf16.mxu0 0
  %430 = vmatpush1.bf16.msra.mxu0 0
  %431 = vmatprep.subr.bf16.mxu0 0
  %432 = vmatpush1.bf16.msra.mxu0 0
  %433 = vmatprep.subr.bf16.mxu0 0
  %434 = vmatpush1.bf16.msra.mxu0 0
  %435 = vmatprep.subr.bf16.mxu0 0
  %436 = vmatpush1.bf16.msra.mxu0 0
  %437 = vmatprep.mubr.bf16.mxu0 0
  %438 = vmatmul.mubr.bf16.gmra.mrb[0].mxu0 %v403
  %v439 = vpop.f32.mrb[0].mxu0
  %v440 = vadd.f32 %v236, %v439
  %v441 = vpop.f32.mrb[0].mxu0
  %v442 = vpop.f32.mrb[0].mxu0
  %v443 = vpop.f32.mrb[0].mxu0
  %444 = vdwg.mxu0
  %v445 = vadd.f32 %v397, %v440
  %v446 = vxor.u32 %v445, 2147483648
  %v447 = vmul.f32 %v446, 1.442695
  %v448 = vpow.pop %v447
  %v449 = vadd.f32 %v448, 1.0
  %v450 = vrcp.pop %v449
  %v451 = vmul.f32 1.0, %v450
  %453 = vrot.lane.b32.xlu0 %v440, 64
  %v454 = vpop.permute.xlu0 %453
  %v456 = vmul.f32 %v451, %v454
  %458 = vrot.lane.b32.xlu0 %v456, 64
  %v459 = vpop.permute.xlu0 %458
  %v461 = vadd.f32 %v397, %v459
  %v462 = vtanh.pop %v461
  %v463 = vsub.f32 1.0, %v451
  %465 = vrot.lane.b32.xlu0 %v462, 96
  %v466 = vpop.permute.xlu0 %465
  %v468 = vmul.f32 %v463, %v466
  %v469 = vmul.f32 %v451, %v395
  %v470 = vadd.f32 %v468, %v469
  %s471 = scalar_lea.vmem [#allocation2], 24
  %v472 = vld [vmem:[%s471] sm:$0xff]
  %v473 = vpack.c.bf16 %v470, %v470
  %475 = vrot.lane.b32.xlu0 %v473, 96
  %v476 = vpop.permute.xlu0 %475
  %v478 = vsel %vm251, %v476, 0
  %480 = vmatprep.subr.bf16.mxu0 0
  %481 = vmatpush1.bf16.msra.mxu0 %v247
  %482 = vmatprep.subr.bf16.mxu0 0
  %483 = vmatpush1.bf16.msra.mxu0 %v248
  %484 = vmatprep.subr.bf16.mxu0 0
  %485 = vmatpush1.bf16.msra.mxu0 0
  %486 = vmatprep.subr.bf16.mxu0 0
  %487 = vmatpush1.bf16.msra.mxu0 0
  %488 = vmatprep.subr.bf16.mxu0 0
  %489 = vmatpush1.bf16.msra.mxu0 0
  %490 = vmatprep.subr.bf16.mxu0 0
  %491 = vmatpush1.bf16.msra.mxu0 0
  %492 = vmatprep.subr.bf16.mxu0 0
  %493 = vmatpush1.bf16.msra.mxu0 0
  %494 = vmatprep.subr.bf16.mxu0 0
  %495 = vmatpush1.bf16.msra.mxu0 0
  %496 = vmatprep.subr.bf16.mxu0 0
  %497 = vmatpush1.bf16.msra.mxu0 0
  %498 = vmatprep.subr.bf16.mxu0 0
  %499 = vmatpush1.bf16.msra.mxu0 0
  %500 = vmatprep.subr.bf16.mxu0 0
  %501 = vmatpush1.bf16.msra.mxu0 0
  %502 = vmatprep.subr.bf16.mxu0 0
  %503 = vmatpush1.bf16.msra.mxu0 0
  %504 = vmatprep.subr.bf16.mxu0 0
  %505 = vmatpush1.bf16.msra.mxu0 0
  %506 = vmatprep.subr.bf16.mxu0 0
  %507 = vmatpush1.bf16.msra.mxu0 0
  %508 = vmatprep.subr.bf16.mxu0 0
  %509 = vmatpush1.bf16.msra.mxu0 0
  %510 = vmatprep.subr.bf16.mxu0 0
  %511 = vmatpush1.bf16.msra.mxu0 0
  %512 = vmatprep.mubr.bf16.mxu0 0
  %513 = vmatmul.mubr.bf16.gmra.mrb[0].mxu0 %v478
  %v514 = vpop.f32.mrb[0].mxu0
  %v515 = vadd.f32 %v236, %v514
  %v516 = vpop.f32.mrb[0].mxu0
  %v517 = vpop.f32.mrb[0].mxu0
  %v518 = vpop.f32.mrb[0].mxu0
  %519 = vdwg.mxu0
  %v520 = vadd.f32 %v472, %v515
  %v521 = vxor.u32 %v520, 2147483648
  %v522 = vmul.f32 %v521, 1.442695
  %v523 = vpow.pop %v522
  %v524 = vadd.f32 %v523, 1.0
  %v525 = vrcp.pop %v524
  %v526 = vmul.f32 1.0, %v525
  %528 = vrot.lane.b32.xlu0 %v515, 64
  %v529 = vpop.permute.xlu0 %528
  %v531 = vmul.f32 %v526, %v529
  %533 = vrot.lane.b32.xlu0 %v531, 64
  %v534 = vpop.permute.xlu0 %533
  %v536 = vadd.f32 %v472, %v534
  %v537 = vtanh.pop %v536
  %v538 = vsub.f32 1.0, %v526
  %540 = vrot.lane.b32.xlu0 %v537, 96
  %v541 = vpop.permute.xlu0 %540
  %v543 = vmul.f32 %v538, %v541
  %v544 = vmul.f32 %v526, %v470
  %v545 = vadd.f32 %v543, %v544
  %s546 = scalar_lea.vmem [#allocation2], 32
  %v547 = vld [vmem:[%s546] sm:$0xff]
  %v548 = vpack.c.bf16 %v545, %v545
  %550 = vrot.lane.b32.xlu0 %v548, 96
  %v551 = vpop.permute.xlu0 %550
  %v553 = vsel %vm251, %v551, 0
  %555 = vmatprep.subr.bf16.mxu0 0
  %556 = vmatpush1.bf16.msra.mxu0 %v247
  %557 = vmatprep.subr.bf16.mxu0 0
  %558 = vmatpush1.bf16.msra.mxu0 %v248
  %559 = vmatprep.subr.bf16.mxu0 0
  %560 = vmatpush1.bf16.msra.mxu0 0
  %561 = vmatprep.subr.bf16.mxu0 0
  %562 = vmatpush1.bf16.msra.mxu0 0
  %563 = vmatprep.subr.bf16.mxu0 0
  %564 = vmatpush1.bf16.msra.mxu0 0
  %565 = vmatprep.subr.bf16.mxu0 0
  %566 = vmatpush1.bf16.msra.mxu0 0
  %567 = vmatprep.subr.bf16.mxu0 0
  %568 = vmatpush1.bf16.msra.mxu0 0
  %569 = vmatprep.subr.bf16.mxu0 0
  %570 = vmatpush1.bf16.msra.mxu0 0
  %571 = vmatprep.subr.bf16.mxu0 0
  %572 = vmatpush1.bf16.msra.mxu0 0
  %573 = vmatprep.subr.bf16.mxu0 0
  %574 = vmatpush1.bf16.msra.mxu0 0
  %575 = vmatprep.subr.bf16.mxu0 0
  %576 = vmatpush1.bf16.msra.mxu0 0
  %577 = vmatprep.subr.bf16.mxu0 0
  %578 = vmatpush1.bf16.msra.mxu0 0
  %579 = vmatprep.subr.bf16.mxu0 0
  %580 = vmatpush1.bf16.msra.mxu0 0
  %581 = vmatprep.subr.bf16.mxu0 0
  %582 = vmatpush1.bf16.msra.mxu0 0
  %583 = vmatprep.subr.bf16.mxu0 0
  %584 = vmatpush1.bf16.msra.mxu0 0
  %585 = vmatprep.subr.bf16.mxu0 0
  %586 = vmatpush1.bf16.msra.mxu0 0
  %587 = vmatprep.mubr.bf16.mxu0 0
  %588 = vmatmul.mubr.bf16.gmra.mrb[0].mxu0 %v553
  %v589 = vpop.f32.mrb[0].mxu0
  %v590 = vadd.f32 %v236, %v589
  %v591 = vpop.f32.mrb[0].mxu0
  %v592 = vpop.f32.mrb[0].mxu0
  %v593 = vpop.f32.mrb[0].mxu0
  %594 = vdwg.mxu0
  %v595 = vadd.f32 %v547, %v590
  %v596 = vxor.u32 %v595, 2147483648
  %v597 = vmul.f32 %v596, 1.442695
  %v598 = vpow.pop %v597
  %v599 = vadd.f32 %v598, 1.0
  %v600 = vrcp.pop %v599
  %v601 = vmul.f32 1.0, %v600
  %603 = vrot.lane.b32.xlu0 %v590, 64
  %v604 = vpop.permute.xlu0 %603
  %v606 = vmul.f32 %v601, %v604
  %608 = vrot.lane.b32.xlu0 %v606, 64
  %v609 = vpop.permute.xlu0 %608
  %v611 = vadd.f32 %v547, %v609
  %v612 = vtanh.pop %v611
  %v613 = vsub.f32 1.0, %v601
  %615 = vrot.lane.b32.xlu0 %v612, 96
  %v616 = vpop.permute.xlu0 %615
  %v618 = vmul.f32 %v613, %v616
  %v619 = vmul.f32 %v601, %v545
  %v620 = vadd.f32 %v618, %v619
  %s621 = scalar_lea.vmem [#allocation2], 40
  %v622 = vld [vmem:[%s621] sm:$0xff]
  %v623 = vpack.c.bf16 %v620, %v620
  %625 = vrot.lane.b32.xlu0 %v623, 96
  %v626 = vpop.permute.xlu0 %625
  %v628 = vsel %vm251, %v626, 0
  %630 = vmatprep.subr.bf16.mxu0 0
  %631 = vmatpush1.bf16.msra.mxu0 %v247
  %632 = vmatprep.subr.bf16.mxu0 0
  %633 = vmatpush1.bf16.msra.mxu0 %v248
  %634 = vmatprep.subr.bf16.mxu0 0
  %635 = vmatpush1.bf16.msra.mxu0 0
  %636 = vmatprep.subr.bf16.mxu0 0
  %637 = vmatpush1.bf16.msra.mxu0 0
  %638 = vmatprep.subr.bf16.mxu0 0
  %639 = vmatpush1.bf16.msra.mxu0 0
  %640 = vmatprep.subr.bf16.mxu0 0
  %641 = vmatpush1.bf16.msra.mxu0 0
  %642 = vmatprep.subr.bf16.mxu0 0
  %643 = vmatpush1.bf16.msra.mxu0 0
  %644 = vmatprep.subr.bf16.mxu0 0
  %645 = vmatpush1.bf16.msra.mxu0 0
  %646 = vmatprep.subr.bf16.mxu0 0
  %647 = vmatpush1.bf16.msra.mxu0 0
  %648 = vmatprep.subr.bf16.mxu0 0
  %649 = vmatpush1.bf16.msra.mxu0 0
  %650 = vmatprep.subr.bf16.mxu0 0
  %651 = vmatpush1.bf16.msra.mxu0 0
  %652 = vmatprep.subr.bf16.mxu0 0
  %653 = vmatpush1.bf16.msra.mxu0 0
  %654 = vmatprep.subr.bf16.mxu0 0
  %655 = vmatpush1.bf16.msra.mxu0 0
  %656 = vmatprep.subr.bf16.mxu0 0
  %657 = vmatpush1.bf16.msra.mxu0 0
  %658 = vmatprep.subr.bf16.mxu0 0
  %659 = vmatpush1.bf16.msra.mxu0 0
  %660 = vmatprep.subr.bf16.mxu0 0
  %661 = vmatpush1.bf16.msra.mxu0 0
  %662 = vmatprep.mubr.bf16.mxu0 0
  %663 = vmatmul.mubr.bf16.gmra.mrb[0].mxu0 %v628
  %v664 = vpop.f32.mrb[0].mxu0
  %v665 = vadd.f32 %v236, %v664
  %v666 = vpop.f32.mrb[0].mxu0
  %v667 = vpop.f32.mrb[0].mxu0
  %v668 = vpop.f32.mrb[0].mxu0
  %669 = vdwg.mxu0
  %v670 = vadd.f32 %v622, %v665
  %v671 = vxor.u32 %v670, 2147483648
  %v672 = vmul.f32 %v671, 1.442695
  %v673 = vpow.pop %v672
  %v674 = vadd.f32 %v673, 1.0
  %v675 = vrcp.pop %v674
  %v676 = vmul.f32 1.0, %v675
  %678 = vrot.lane.b32.xlu0 %v665, 64
  %v679 = vpop.permute.xlu0 %678
  %v681 = vmul.f32 %v676, %v679
  %683 = vrot.lane.b32.xlu0 %v681, 64
  %v684 = vpop.permute.xlu0 %683
  %v686 = vadd.f32 %v622, %v684
  %v687 = vtanh.pop %v686
  %v688 = vsub.f32 1.0, %v676
  %690 = vrot.lane.b32.xlu0 %v687, 96
  %v691 = vpop.permute.xlu0 %690
  %v693 = vmul.f32 %v688, %v691
  %v694 = vmul.f32 %v676, %v620
  %v695 = vadd.f32 %v693, %v694
  %s696 = scalar_lea.vmem [#allocation2], 48
  %v697 = vld [vmem:[%s696] sm:$0xff]
  %v698 = vpack.c.bf16 %v695, %v695
  %700 = vrot.lane.b32.xlu0 %v698, 96
  %v701 = vpop.permute.xlu0 %700
  %v703 = vsel %vm251, %v701, 0
  %705 = vmatprep.subr.bf16.mxu0 0
  %706 = vmatpush1.bf16.msra.mxu0 %v247
  %707 = vmatprep.subr.bf16.mxu0 0
  %708 = vmatpush1.bf16.msra.mxu0 %v248
  %709 = vmatprep.subr.bf16.mxu0 0
  %710 = vmatpush1.bf16.msra.mxu0 0
  %711 = vmatprep.subr.bf16.mxu0 0
  %712 = vmatpush1.bf16.msra.mxu0 0
  %713 = vmatprep.subr.bf16.mxu0 0
  %714 = vmatpush1.bf16.msra.mxu0 0
  %715 = vmatprep.subr.bf16.mxu0 0
  %716 = vmatpush1.bf16.msra.mxu0 0
  %717 = vmatprep.subr.bf16.mxu0 0
  %718 = vmatpush1.bf16.msra.mxu0 0
  %719 = vmatprep.subr.bf16.mxu0 0
  %720 = vmatpush1.bf16.msra.mxu0 0
  %721 = vmatprep.subr.bf16.mxu0 0
  %722 = vmatpush1.bf16.msra.mxu0 0
  %723 = vmatprep.subr.bf16.mxu0 0
  %724 = vmatpush1.bf16.msra.mxu0 0
  %725 = vmatprep.subr.bf16.mxu0 0
  %726 = vmatpush1.bf16.msra.mxu0 0
  %727 = vmatprep.subr.bf16.mxu0 0
  %728 = vmatpush1.bf16.msra.mxu0 0
  %729 = vmatprep.subr.bf16.mxu0 0
  %730 = vmatpush1.bf16.msra.mxu0 0
  %731 = vmatprep.subr.bf16.mxu0 0
  %732 = vmatpush1.bf16.msra.mxu0 0
  %733 = vmatprep.subr.bf16.mxu0 0
  %734 = vmatpush1.bf16.msra.mxu0 0
  %735 = vmatprep.subr.bf16.mxu0 0
  %736 = vmatpush1.bf16.msra.mxu0 0
  %737 = vmatprep.mubr.bf16.mxu0 0
  %738 = vmatmul.mubr.bf16.gmra.mrb[0].mxu0 %v703
  %v739 = vpop.f32.mrb[0].mxu0
  %v740 = vadd.f32 %v236, %v739
  %v741 = vpop.f32.mrb[0].mxu0
  %v742 = vpop.f32.mrb[0].mxu0
  %v743 = vpop.f32.mrb[0].mxu0
  %744 = vdwg.mxu0
  %v745 = vadd.f32 %v697, %v740
  %v746 = vxor.u32 %v745, 2147483648
  %v747 = vmul.f32 %v746, 1.442695
  %v748 = vpow.pop %v747
  %v749 = vadd.f32 %v748, 1.0
  %v750 = vrcp.pop %v749
  %v751 = vmul.f32 1.0, %v750
  %753 = vrot.lane.b32.xlu0 %v740, 64
  %v754 = vpop.permute.xlu0 %753
  %v756 = vmul.f32 %v751, %v754
  %758 = vrot.lane.b32.xlu0 %v756, 64
  %v759 = vpop.permute.xlu0 %758
  %v761 = vadd.f32 %v697, %v759
  %v762 = vtanh.pop %v761
  %v763 = vsub.f32 1.0, %v751
  %765 = vrot.lane.b32.xlu0 %v762, 96
  %v766 = vpop.permute.xlu0 %765
  %v768 = vmul.f32 %v763, %v766
  %v769 = vmul.f32 %v751, %v695
  %v770 = vadd.f32 %v768, %v769
  %s771 = scalar_lea.vmem [#allocation2], 56
  %v772 = vld [vmem:[%s771] sm:$0xff]
  %v773 = vpack.c.bf16 %v770, %v770
  %775 = vrot.lane.b32.xlu0 %v773, 96
  %v776 = vpop.permute.xlu0 %775
  %v778 = vsel %vm251, %v776, 0
  %780 = vmatprep.subr.bf16.mxu0 0
  %781 = vmatpush1.bf16.msra.mxu0 %v247
  %782 = vmatprep.subr.bf16.mxu0 0
  %783 = vmatpush1.bf16.msra.mxu0 %v248
  %784 = vmatprep.subr.bf16.mxu0 0
  %785 = vmatpush1.bf16.msra.mxu0 0
  %786 = vmatprep.subr.bf16.mxu0 0
  %787 = vmatpush1.bf16.msra.mxu0 0
  %788 = vmatprep.subr.bf16.mxu0 0
  %789 = vmatpush1.bf16.msra.mxu0 0
  %790 = vmatprep.subr.bf16.mxu0 0
  %791 = vmatpush1.bf16.msra.mxu0 0
  %792 = vmatprep.subr.bf16.mxu0 0
  %793 = vmatpush1.bf16.msra.mxu0 0
  %794 = vmatprep.subr.bf16.mxu0 0
  %795 = vmatpush1.bf16.msra.mxu0 0
  %796 = vmatprep.subr.bf16.mxu0 0
  %797 = vmatpush1.bf16.msra.mxu0 0
  %798 = vmatprep.subr.bf16.mxu0 0
  %799 = vmatpush1.bf16.msra.mxu0 0
  %800 = vmatprep.subr.bf16.mxu0 0
  %801 = vmatpush1.bf16.msra.mxu0 0
  %802 = vmatprep.subr.bf16.mxu0 0
  %803 = vmatpush1.bf16.msra.mxu0 0
  %804 = vmatprep.subr.bf16.mxu0 0
  %805 = vmatpush1.bf16.msra.mxu0 0
  %806 = vmatprep.subr.bf16.mxu0 0
  %807 = vmatpush1.bf16.msra.mxu0 0
  %808 = vmatprep.subr.bf16.mxu0 0
  %809 = vmatpush1.bf16.msra.mxu0 0
  %810 = vmatprep.subr.bf16.mxu0 0
  %811 = vmatpush1.bf16.msra.mxu0 0
  %812 = vmatprep.mubr.bf16.mxu0 0
  %813 = vmatmul.mubr.bf16.gmra.mrb[0].mxu0 %v778
  %v814 = vpop.f32.mrb[0].mxu0
  %v815 = vadd.f32 %v236, %v814
  %v816 = vpop.f32.mrb[0].mxu0
  %v817 = vpop.f32.mrb[0].mxu0
  %v818 = vpop.f32.mrb[0].mxu0
  %819 = vdwg.mxu0
  %v820 = vadd.f32 %v772, %v815
  %v821 = vxor.u32 %v820, 2147483648
  %v822 = vmul.f32 %v821, 1.442695
  %v823 = vpow.pop %v822
  %v824 = vadd.f32 %v823, 1.0
  %v825 = vrcp.pop %v824
  %v826 = vmul.f32 1.0, %v825
  %828 = vrot.lane.b32.xlu0 %v815, 64
  %v829 = vpop.permute.xlu0 %828
  %v831 = vmul.f32 %v826, %v829
  %833 = vrot.lane.b32.xlu0 %v831, 64
  %v834 = vpop.permute.xlu0 %833
  %v836 = vadd.f32 %v772, %v834
  %v837 = vtanh.pop %v836
  %v838 = vsub.f32 1.0, %v826
  %840 = vrot.lane.b32.xlu0 %v837, 96
  %v841 = vpop.permute.xlu0 %840
  %v843 = vmul.f32 %v838, %v841
  %v844 = vmul.f32 %v826, %v770
  %v845 = vadd.f32 %v843, %v844
  %v846 = vpack.c.bf16 %v845, %v845
  %v847 = vld [vmem:[%s4] sm:$0xf]
  %v848 = vld [vmem:[%s4 + $0x4] sm:$0xf]
  %v849 = vld [vmem:[%s4 + $0x8] sm:$0xf]
  %v850 = vld [vmem:[%s4 + $0xc] sm:$0xf]
  %v851 = vld [vmem:[%s5] sm:$0x1]
  %v853 = vlaneseq
  %v854 = vshrl.u32 %v853, 7
  %v855 = vsub.s32 0, %v854
  %v856 = vrot.slane %v851, %v855
  %859 = vrot.lane.b32.xlu0 %v846, 96
  %v860 = vpop.permute.xlu0 %859
  %v865 = vunpack.c.l.b16 %v847
  %v866 = vunpack.c.l.b16 %v848
  %v867 = vunpack.c.l.b16 %v849
  %v868 = vunpack.c.l.b16 %v850
  %v869 = vpack.c.b16 %v866, %v865
  %v870 = vpack.c.b16 %v868, %v867
  %v874 = vsel %vm251, %v860, 0
  %876 = vmatprep.subr.bf16.mxu0 0
  %877 = vmatpush1.bf16.msra.mxu0 %v869
  %878 = vmatprep.subr.bf16.mxu0 0
  %879 = vmatpush1.bf16.msra.mxu0 %v870
  %880 = vmatprep.subr.bf16.mxu0 0
  %881 = vmatpush1.bf16.msra.mxu0 0
  %882 = vmatprep.subr.bf16.mxu0 0
  %883 = vmatpush1.bf16.msra.mxu0 0
  %884 = vmatprep.subr.bf16.mxu0 0
  %885 = vmatpush1.bf16.msra.mxu0 0
  %886 = vmatprep.subr.bf16.mxu0 0
  %887 = vmatpush1.bf16.msra.mxu0 0
  %888 = vmatprep.subr.bf16.mxu0 0
  %889 = vmatpush1.bf16.msra.mxu0 0
  %890 = vmatprep.subr.bf16.mxu0 0
  %891 = vmatpush1.bf16.msra.mxu0 0
  %892 = vmatprep.subr.bf16.mxu0 0
  %893 = vmatpush1.bf16.msra.mxu0 0
  %894 = vmatprep.subr.bf16.mxu0 0
  %895 = vmatpush1.bf16.msra.mxu0 0
  %896 = vmatprep.subr.bf16.mxu0 0
  %897 = vmatpush1.bf16.msra.mxu0 0
  %898 = vmatprep.subr.bf16.mxu0 0
  %899 = vmatpush1.bf16.msra.mxu0 0
  %900 = vmatprep.subr.bf16.mxu0 0
  %901 = vmatpush1.bf16.msra.mxu0 0
  %902 = vmatprep.subr.bf16.mxu0 0
  %903 = vmatpush1.bf16.msra.mxu0 0
  %904 = vmatprep.subr.bf16.mxu0 0
  %905 = vmatpush1.bf16.msra.mxu0 0
  %906 = vmatprep.subr.bf16.mxu0 0
  %907 = vmatpush1.bf16.msra.mxu0 0
  %908 = vmatprep.mubr.bf16.mxu0 0
  %909 = vmatmul.mubr.bf16.gmra.mrb[0].mxu0 %v874
  %v910 = vpop.f32.mrb[0].mxu0
  %v911 = vadd.f32 %v856, %v910
  %v912 = vpop.f32.mrb[0].mxu0
  %v913 = vpop.f32.mrb[0].mxu0
  %v914 = vpop.f32.mrb[0].mxu0
  %915 = vdwg.mxu0
  %916 = vst [vmem:[%s6] sm:$0xff] %v911
  // Predicated region
  $region26: #{emogru_forward.1} parent=0 // pred_check
    _
  $region27: #{emogru_forward.1} parent=0 // pred_check_branch
    %918 = sbr.rel (0) target = $region29
  $region28: #{emogru_forward.1} parent=0 // pred_region
    _
  $region29: #{emogru_forward.1} parent=0 // pred_fallthru
    _
  // Predicated region
  $region30: #{emogru_forward.1} parent=0 // pred_check
    _
  $region31: #{emogru_forward.1} parent=0 // pred_check_branch
    %920 = sbr.rel (0) target = $region33
  $region32: #{emogru_forward.1} parent=0 // pred_region
    _
  $region33: #{emogru_forward.1} parent=0 // pred_fallthru
    _

</llo_original>
